<compile_context>
chip_gen: v7x
topology: tpu7x:2x2x1
jax: 0.10.0
libtpu: 0.0.40
codegen_flags: <defaults>
</compile_context>

<pallas_src>
import jax
import jax.numpy as jnp
from jax.experimental import pallas as pl
from jax.experimental.pallas import tpu as pltpu


_MAX_LANE_TILE = 32768   # lanes; MiB-class per-step DMAs, bounded intermediates


def _round_up(x, m):
    return (x + m - 1) // m * m


def _vmem_budget():
    """Returns (tile_budget_bytes, vmem_limit_bytes), generation aware."""
    cap = None
    try:
        cap = pltpu.get_tpu_info().vmem_capacity_bytes
    except Exception:
        cap = None
    if cap is None or cap <= 64 * 1024 * 1024:
        # v7x (64 MiB physical per TensorCore) or unknown: stay conservative,
        # these limits are safe on every generation.
        return 40 * 1024 * 1024, 56 * 1024 * 1024
    # v5e / v6e: 128 MiB physical VMEM.
    return 96 * 1024 * 1024, 112 * 1024 * 1024


def _choose_tiling(N, C_in, C_out, HW, itemsize, tile_budget):
    """Pick (nb, thw): images per grid step and lane-tile size."""
    sub = max(8, 32 // itemsize)               # sublane packing: f32=8, bf16=16
    cin_p = _round_up(C_in, sub)
    cout_p = _round_up(C_out, sub)
    hw_cap = _round_up(HW, 128)

    # Resident weight + bias buffers (double-buffered, sublane/lane padded).
    fixed = 2 * (_round_up(C_out, sub) * _round_up(C_in, 128) * itemsize
                 + _round_up(C_out, 8) * 128 * 4)
    budget = max(tile_budget - fixed, 1 << 20)

    # Per lane-column cost: x + out double-buffered pipeline blocks plus one
    # f32-sized allowance for in-kernel intermediates (cast / accumulator).
    per_col = (cin_p + cout_p) * (2 * itemsize + 4)
    thw = min(hw_cap, _MAX_LANE_TILE,
              max(128, (budget // per_col) // 128 * 128))

    # v7x has 2 TensorCores: when a single image would otherwise be one giant
    # tile, split H*W so the (parallel) grid has at least 2 steps.
    if N == 1 and thw >= hw_cap and HW > 256:
        thw = min(thw, _round_up(pl.cdiv(HW, 2), 128))

    if thw < hw_cap:
        return 1, thw                          # tile along H*W, one image/step

    # Whole image fits in one lane tile: batch images per step so each step
    # moves ~1 MiB of x+out traffic (amortize the ~0.35 us/step overhead).
    thw = HW                                   # == full dim -> no 128 rule
    per_img = (cin_p + cout_p) * hw_cap * itemsize
    nb = min(N,
             max(1, budget // ((2 * itemsize + 4) * (cin_p + cout_p) * hw_cap)),
             max(1, (1 << 20) // max(per_img, 1)))
    if N >= 2:
        nb = min(nb, pl.cdiv(N, 2))            # keep >= 2 grid steps (2 TCs)
    return max(nb, 1), thw


def _make_kernel(nb, c_in, use_vpu, in_dtype):
    mxu_kwargs = dict(preferred_element_type=jnp.float32)
    if in_dtype == jnp.float32:
        # Memory-bound kernel: full-f32 MXU passes are free and match torch.
        mxu_kwargs["precision"] = jax.lax.Precision.HIGHEST

    def kernel(x_ref, w_ref, b_ref, o_ref):
        # x_ref: (nb, C_in, thw)  lane-dense pixel tile
        # w_ref: (C_out, C_in)    resident weight
        # b_ref: (C_out, 1)       resident bias (f32)
        # o_ref: (nb, C_out, thw) lane-dense output tile
        b = b_ref[...]
        w = w_ref[...].astype(jnp.float32) if use_vpu else w_ref[...]
        for i in range(nb):                    # nb is a small static constant
            if use_vpu:
                # Exact-f32 broadcast-MAC on the (otherwise idle) VPU.
                x = x_ref[i].astype(jnp.float32)              # (C_in, thw)
                acc = w[:, 0:1] * x[0:1, :]                   # (C_out, thw)
                for ci in range(1, c_in):
                    acc = acc + w[:, ci:ci + 1] * x[ci:ci + 1, :]
            else:
                acc = jnp.dot(w, x_ref[i], **mxu_kwargs)      # MXU
            o_ref[i] = (acc + b).astype(o_ref.dtype)

    return kernel


def output_conv(x_nchw, weight, bias):
    """1x1 conv with the semantics of nn.Conv2d(in_channels, out_channels, 1).

    x_nchw: (N, C_in, H, W)
    weight: (C_out, C_in, 1, 1)   (PyTorch conv weight layout)
    bias:   (C_out,)
    returns (N, C_out, H, W), same dtype as x.
    """
    N, C_in, H, W = x_nchw.shape
    C_out = weight.shape[0]
    HW = H * W

    # Free reshapes only (no transposes): NCHW-native compute layout.
    x3d = x_nchw.reshape(N, C_in, HW)
    w2d = weight.reshape(C_out, C_in)
    b2d = bias.reshape(C_out, 1).astype(jnp.float32)

    tile_budget, vmem_limit = _vmem_budget()
    nb, thw = _choose_tiling(N, C_in, C_out, HW, x_nchw.dtype.itemsize,
                             tile_budget)
    use_vpu = C_in <= 8

    grid = (pl.cdiv(N, nb), pl.cdiv(HW, thw))   # masked edge blocks, no pad

    out3d = pl.pallas_call(
        _make_kernel(nb, C_in, use_vpu, x_nchw.dtype),
        out_shape=jax.ShapeDtypeStruct((N, C_out, HW), x_nchw.dtype),
        grid_spec=pltpu.PrefetchScalarGridSpec(
            num_scalar_prefetch=0,
            grid=grid,
            in_specs=[
                # Pixel tile: lane axis = H*W (lane-dense loads and stores).
                pl.BlockSpec((nb, C_in, thw), lambda n, t: (n, 0, t)),
                # Weight / bias: constant block index -> resident across grid.
                pl.BlockSpec((C_out, C_in), lambda n, t: (0, 0)),
                pl.BlockSpec((C_out, 1), lambda n, t: (0, 0)),
            ],
            out_specs=pl.BlockSpec((nb, C_out, thw), lambda n, t: (n, 0, t)),
        ),
        # Both grid axes are independent -> shard across TensorCores on v7x.
        compiler_params=pltpu.CompilerParams(
            dimension_semantics=("parallel", "parallel"),
            vmem_limit_bytes=vmem_limit,
        ),
    )(x3d, w2d, b2d)

    return out3d.reshape(N, C_out, H, W)


def _reference(x, weight, bias):
    C_out, C_in = weight.shape[0], weight.shape[1]
    return jnp.einsum("nchw,oc->nohw", x, weight.reshape(C_out, C_in),
                      precision=jax.lax.Precision.HIGHEST) \
        + bias.reshape(1, C_out, 1, 1)


if __name__ == "__main__":
    key = jax.random.PRNGKey(0)
    kx, kw, kb = jax.random.split(key, 3)

    N, C_in, C_out, H, W = 2, 4, 3, 16, 16

    x = jax.random.normal(kx, (N, C_in, H, W), dtype=jnp.float32)
    weight = jax.random.normal(kw, (C_out, C_in, 1, 1), dtype=jnp.float32) * 0.1
    bias = jax.random.normal(kb, (C_out,), dtype=jnp.float32) * 0.1

    y = jax.block_until_ready(output_conv(x, weight, bias))
    assert y.shape == (N, C_out, H, W)
    assert jnp.allclose(y, _reference(x, weight, bias), atol=1e-5, rtol=1e-5)

    # Ragged spatial size (H*W not a multiple of the lane tile) exercises the
    # masked edge-block path (no jnp.pad of x, no output slice).
    x2 = jax.random.normal(kx, (N, C_in, 5, 7), dtype=jnp.float32)
    y2 = jax.block_until_ready(output_conv(x2, weight, bias))
    assert y2.shape == (N, C_out, 5, 7)
    assert jnp.allclose(y2, _reference(x2, weight, bias), atol=1e-5, rtol=1e-5)

    print("KERNEL_OK")
</pallas_src>

<mosaic_0001>
module attributes {stable_mosaic.version = 11 : i64} {
  func.func @kernel(%arg0: i32, %arg1: i32, %arg2: memref<1x4x256xf32, #tpu.memory_space<vmem>>, %arg3: memref<3x4xf32, #tpu.memory_space<vmem>>, %arg4: memref<3x1xf32, #tpu.memory_space<vmem>>, %arg5: memref<1x3x256xf32, #tpu.memory_space<vmem>>) attributes {dimension_semantics = [#tpu.dimension_semantics<parallel>, #tpu.dimension_semantics<parallel>], iteration_bounds = array<i64: 2, 1>, scalar_prefetch = 0 : i64, scratch_operands = 0 : i64, tpu.core_type = #tpu.core_type<tc>, window_params = [{transform_indices = @transform_0, window_bounds = array<i64: 1, 4, 256>}, {pipeline_mode = #tpu.pipeline_mode<synchronous>, transform_indices = @transform_1, window_bounds = array<i64: 3, 4>}, {pipeline_mode = #tpu.pipeline_mode<synchronous>, transform_indices = @transform_2, window_bounds = array<i64: 3, 1>}, {transform_indices = @transform_3, window_bounds = array<i64: 1, 3, 256>}]} {
    %c0 = arith.constant 0 : index
    %c0_0 = arith.constant 0 : index
    %0 = vector.load %arg4[%c0, %c0_0] : memref<3x1xf32, #tpu.memory_space<vmem>>, vector<3x1xf32>
    %c0_1 = arith.constant 0 : index
    %c0_2 = arith.constant 0 : index
    %1 = vector.load %arg3[%c0_1, %c0_2] : memref<3x4xf32, #tpu.memory_space<vmem>>, vector<3x4xf32>
    %c0_3 = arith.constant 0 : index
    %c0_4 = arith.constant 0 : index
    %c0_5 = arith.constant 0 : index
    %2 = vector.load %arg2[%c0_3, %c0_4, %c0_5] : memref<1x4x256xf32, #tpu.memory_space<vmem>>, vector<1x4x256xf32>
    %3 = vector.shape_cast %2 : vector<1x4x256xf32> to vector<4x256xf32>
    %4 = vector.extract_strided_slice %1 {offsets = [0, 0], sizes = [3, 1], strides = [1, 1]} : vector<3x4xf32> to vector<3x1xf32>
    %5 = vector.extract_strided_slice %3 {offsets = [0, 0], sizes = [1, 256], strides = [1, 1]} : vector<4x256xf32> to vector<1x256xf32>
    %6 = vector.broadcast %4 : vector<3x1xf32> to vector<3x256xf32>
    %7 = vector.broadcast %5 : vector<1x256xf32> to vector<3x256xf32>
    %8 = arith.mulf %6, %7 : vector<3x256xf32>
    %9 = vector.extract_strided_slice %1 {offsets = [0, 1], sizes = [3, 1], strides = [1, 1]} : vector<3x4xf32> to vector<3x1xf32>
    %10 = vector.extract_strided_slice %3 {offsets = [1, 0], sizes = [1, 256], strides = [1, 1]} : vector<4x256xf32> to vector<1x256xf32>
    %11 = vector.broadcast %9 : vector<3x1xf32> to vector<3x256xf32>
    %12 = vector.broadcast %10 : vector<1x256xf32> to vector<3x256xf32>
    %13 = arith.mulf %11, %12 : vector<3x256xf32>
    %14 = arith.addf %8, %13 : vector<3x256xf32>
    %15 = vector.extract_strided_slice %1 {offsets = [0, 2], sizes = [3, 1], strides = [1, 1]} : vector<3x4xf32> to vector<3x1xf32>
    %16 = vector.extract_strided_slice %3 {offsets = [2, 0], sizes = [1, 256], strides = [1, 1]} : vector<4x256xf32> to vector<1x256xf32>
    %17 = vector.broadcast %15 : vector<3x1xf32> to vector<3x256xf32>
    %18 = vector.broadcast %16 : vector<1x256xf32> to vector<3x256xf32>
    %19 = arith.mulf %17, %18 : vector<3x256xf32>
    %20 = arith.addf %14, %19 : vector<3x256xf32>
    %21 = vector.extract_strided_slice %1 {offsets = [0, 3], sizes = [3, 1], strides = [1, 1]} : vector<3x4xf32> to vector<3x1xf32>
    %22 = vector.extract_strided_slice %3 {offsets = [3, 0], sizes = [1, 256], strides = [1, 1]} : vector<4x256xf32> to vector<1x256xf32>
    %23 = vector.broadcast %21 : vector<3x1xf32> to vector<3x256xf32>
    %24 = vector.broadcast %22 : vector<1x256xf32> to vector<3x256xf32>
    %25 = arith.mulf %23, %24 : vector<3x256xf32>
    %26 = arith.addf %20, %25 : vector<3x256xf32>
    %27 = vector.broadcast %0 : vector<3x1xf32> to vector<3x256xf32>
    %28 = arith.addf %26, %27 : vector<3x256xf32>
    %c0_6 = arith.constant 0 : index
    %c0_7 = arith.constant 0 : index
    %c0_8 = arith.constant 0 : index
    %29 = vector.load %arg5[%c0_6, %c0_7, %c0_8] : memref<1x3x256xf32, #tpu.memory_space<vmem>>, vector<1x3x256xf32>
    %30 = vector.shape_cast %29 : vector<1x3x256xf32> to vector<3x256xf32>
    %31 = vector.shape_cast %28 : vector<3x256xf32> to vector<1x3x256xf32>
    tpu.vector_store %arg5[%c0_6, %c0_7, %c0_8], %31 {strides = array<i32>} : memref<1x3x256xf32, #tpu.memory_space<vmem>>, vector<1x3x256xf32>,
    return
  }
  func.func @transform_0(%arg0: i32, %arg1: i32) -> (i32, i32, i32) {
    %c0_i32 = arith.constant 0 : i32
    %c0_i32_0 = arith.constant 0 : i32
    return %arg0, %c0_i32, %arg1 : i32, i32, i32
  }
  func.func @transform_1(%arg0: i32, %arg1: i32) -> (i32, i32) {
    %c0_i32 = arith.constant 0 : i32
    %c0_i32_0 = arith.constant 0 : i32
    %c0_i32_1 = arith.constant 0 : i32
    return %c0_i32, %c0_i32_0 : i32, i32
  }
  func.func @transform_2(%arg0: i32, %arg1: i32) -> (i32, i32) {
    %c0_i32 = arith.constant 0 : i32
    %c0_i32_0 = arith.constant 0 : i32
    %c0_i32_1 = arith.constant 0 : i32
    return %c0_i32, %c0_i32_0 : i32, i32
  }
  func.func @transform_3(%arg0: i32, %arg1: i32) -> (i32, i32, i32) {
    %c0_i32 = arith.constant 0 : i32
    %c0_i32_0 = arith.constant 0 : i32
    return %arg0, %c0_i32, %arg1 : i32, i32, i32
  }
}

</mosaic_0001>

<llo_original>
// kernel: tpu_custom_call.1
$region0: #{tpu_custom_call.1}
  #allocation0 [shape = 'u32[]', space=smem, size = 0x4, offset = 0x4, fixed_abs, tag = 'smem constant byte address 0x4 - core index']
  #allocation1 [shape = 'u32[144,128]{1,0:T(1,128)}', space=vmem, size = 0x12000, scoped, tag = 'internal scratch']
  %s0 = inlined_call_operand.hbm [shape: f32[2,4,256], index: 0, kind: input, shape index: {}]
  %s1 = inlined_call_operand.vmem [shape: f32[3,4], index: 1, kind: input, shape index: {}]
  %s2 = inlined_call_operand.vmem [shape: f32[3,1], index: 2, kind: input, shape index: {}]
  %s3 = inlined_call_operand.vmem [shape: f32[2,3,256], index: 3, kind: output, shape index: {}]
  %s4 = sld [smem:[#allocation0]]
  $region49: #{tpu_custom_call.1} parent=0
    _
  %s6 = ssub.s32 1, %s4
  %s7 = scalar_select 0, %s6, %s4
  $region1: #{tpu_custom_call.1} parent=0
    #allocation2 [shape = 'u8[8192]{0}', space=vmem, size = 0x2000, scoped, tag = 'input window, operand 0']
    #allocation3 [shape = 's32[2]{0}', space=sflag, size = 0x8, scoped, tag = 'scoped memory for tpu_custom_call.1']
    %8 = vsyncpa [#allocation3], 0
    %s9 = scalar_lea.sflag [#allocation3], 1
    %10 = vsyncpa %s9, 0
    loop: start=0, step=1, limit=4
    $region2: #{tpu_custom_call.1} parent=1 // loop_pre_header
      _
    $region3: #{tpu_custom_call.1} parent=1 // loop_header
      %s12 = sphi 0, %s16
      %p13 = scmp.ge.s32.totalorder %s12, 4
      %s19 = sphi 0, %s31
      %s20 = sphi 0, %s27
      %s21 = sphi 0, %s19
      %s22 = sphi 0, %s20
      %s23 = sphi 0, %s21
      %s24 = sphi 0, %s22
      %s36 = sphi 0, %s38
      %s39 = sphi 0, %s36
      %s40 = sphi 0, %s39
      %s56 = sphi 0, %s40
      %s60 = sphi 0, %s60
      %s62 = sphi 0, %s60
      %s63 = sphi 0, %s62
      %s77 = sphi 0, %s63
      %s81 = sphi 0, %s81
      %s83 = sphi 0, %s81
      %s84 = sphi 0, %s83
      %s98 = sphi 0, %s84
      %s106 = sphi 0, %s108
      %s109 = sphi 0, %s106
      %s110 = sphi 0, %s109
      %s126 = sphi 0, %s110
    $region4: #{tpu_custom_call.1} parent=1 // loop_header_branch
      %15 = sbr.rel (%p13) target = $region8
    $region5: #{tpu_custom_call.1} parent=1 // loop_body
      %s17 = ssub.s32 %s12, 1
      %s18 = ssub.s32 %s12, 2
      %s25 = sadd.s32 1, %s20
      %p26 = scmp.ge.s32.totalorder %s25, 1
      %s27 = scalar_select %p26, 0, %s25
      %s28 = sadd.s32 1, %s19
      %s29 = scalar_select %p26, %s28, %s19
      %p30 = scmp.ge.s32.totalorder %s29, 2
      %s31 = scalar_select %p30, 0, %s29
      %s32 = ssub.s32 %s19, %s31
      %s33 = ssub.s32 %s20, %s27
      %s34 = sor.u32 %s32, %s33
      %p35 = scmp.eq.s32.totalorder %s34, 0
      %s37 = sadd.s32 %s36, 1
      %s38 = scalar_select %p35, %s36, %s37
      %p41 = pneg %p35
      %p42 = scmp.eq.s32.totalorder %s12, 1
      %p43 = por %p41, %p42
      %p44 = scmp.ne.s32.totalorder %s36, %s39
      %p45 = scmp.eq.s32.totalorder %s12, 0
      %p46 = por %p44, %p45
      %p47 = scmp.ne.s32.totalorder %s36, %s39
      %p48 = scmp.eq.s32.totalorder %s17, 1
      %p49 = por %p47, %p48
      %p50 = scmp.ne.s32.totalorder %s39, %s40
      %p51 = scmp.eq.s32.totalorder %s17, 0
      %p52 = por %p50, %p51
      %p53 = scmp.ne.s32.totalorder %s39, %s40
      %p54 = scmp.eq.s32.totalorder %s18, 1
      %p55 = por %p53, %p54
      %p57 = scmp.ne.s32.totalorder %s40, %s56
      %p58 = scmp.eq.s32.totalorder %s18, 0
      %p59 = por %p57, %p58
      %s61 = sadd.s32 %s60, 1
      %p64 = scmp.eq.s32.totalorder %s12, 1
      %p65 = scmp.ne.s32.totalorder %s60, %s62
      %p66 = scmp.eq.s32.totalorder %s12, 0
      %p67 = por %p65, %p66
      %p68 = scmp.ne.s32.totalorder %s60, %s62
      %p69 = scmp.eq.s32.totalorder %s17, 1
      %p70 = por %p68, %p69
      %p71 = scmp.ne.s32.totalorder %s62, %s63
      %p72 = scmp.eq.s32.totalorder %s17, 0
      %p73 = por %p71, %p72
      %p74 = scmp.ne.s32.totalorder %s62, %s63
      %p75 = scmp.eq.s32.totalorder %s18, 1
      %p76 = por %p74, %p75
      %p78 = scmp.ne.s32.totalorder %s63, %s77
      %p79 = scmp.eq.s32.totalorder %s18, 0
      %p80 = por %p78, %p79
      %s82 = sadd.s32 %s81, 1
      %p85 = scmp.eq.s32.totalorder %s12, 1
      %p86 = scmp.ne.s32.totalorder %s81, %s83
      %p87 = scmp.eq.s32.totalorder %s12, 0
      %p88 = por %p86, %p87
      %p89 = scmp.ne.s32.totalorder %s81, %s83
      %p90 = scmp.eq.s32.totalorder %s17, 1
      %p91 = por %p89, %p90
      %p92 = scmp.ne.s32.totalorder %s83, %s84
      %p93 = scmp.eq.s32.totalorder %s17, 0
      %p94 = por %p92, %p93
      %p95 = scmp.ne.s32.totalorder %s83, %s84
      %p96 = scmp.eq.s32.totalorder %s18, 1
      %p97 = por %p95, %p96
      %p99 = scmp.ne.s32.totalorder %s84, %s98
      %p100 = scmp.eq.s32.totalorder %s18, 0
      %p101 = por %p99, %p100
      %s102 = ssub.s32 %s19, %s31
      %s103 = ssub.s32 %s20, %s27
      %s104 = sor.u32 %s102, %s103
      %p105 = scmp.eq.s32.totalorder %s104, 0
      %s107 = sadd.s32 %s106, 1
      %s108 = scalar_select %p105, %s106, %s107
      %p111 = pneg %p105
      %p112 = scmp.eq.s32.totalorder %s12, 1
      %p113 = por %p111, %p112
      %p114 = scmp.ne.s32.totalorder %s106, %s109
      %p115 = scmp.eq.s32.totalorder %s12, 0
      %p116 = por %p114, %p115
      %p117 = scmp.ne.s32.totalorder %s106, %s109
      %p118 = scmp.eq.s32.totalorder %s17, 1
      %p119 = por %p117, %p118
      %p120 = scmp.ne.s32.totalorder %s109, %s110
      %p121 = scmp.eq.s32.totalorder %s17, 0
      %p122 = por %p120, %p121
      %p123 = scmp.ne.s32.totalorder %s109, %s110
      %p124 = scmp.eq.s32.totalorder %s18, 1
      %p125 = por %p123, %p124
      %p127 = scmp.ne.s32.totalorder %s110, %s126
      %p128 = scmp.eq.s32.totalorder %s18, 0
      %p129 = por %p127, %p128
      %p130 = scmp.le.s32.totalorder 1, %s12
      %p131 = scmp.lt.s32.totalorder %s12, 3
      %p132 = pnand %p130, %p131
      %p133 = pneg %p132
      // Predicated region
      $region9: #{tpu_custom_call.1} parent=5 // pred_check
        _
      $region10: #{tpu_custom_call.1} parent=5 // pred_check_branch
        %135 = sbr.rel (%p132) target = $region12
      $region11: #{tpu_custom_call.1} parent=5 // pred_region
        %s136 = ssub.s32 %s12, 1
        // Predicated region
        $region13: #{tpu_custom_call.1} parent=11 // pred_check
          %p137 = pneg %p73
        $region14: #{tpu_custom_call.1} parent=11 // pred_check_branch
          %139 = sbr.rel (%p137) target = $region16
        $region15: #{tpu_custom_call.1} parent=11 // pred_region
          _
        $region16: #{tpu_custom_call.1} parent=11 // pred_fallthru
          _
        // Predicated region
        $region17: #{tpu_custom_call.1} parent=11 // pred_check
          %p140 = pneg %p94
        $region18: #{tpu_custom_call.1} parent=11 // pred_check_branch
          %142 = sbr.rel (%p140) target = $region20
        $region19: #{tpu_custom_call.1} parent=11 // pred_region
          _
        $region20: #{tpu_custom_call.1} parent=11 // pred_fallthru
          _
      $region12: #{tpu_custom_call.1} parent=5 // pred_fallthru
        _
      %p143 = scmp.lt.s32.totalorder %s12, 2
      // Predicated region
      $region21: #{tpu_custom_call.1} parent=5 // pred_check
        %p144 = pneg %p143
      $region22: #{tpu_custom_call.1} parent=5 // pred_check_branch
        %146 = sbr.rel (%p144) target = $region24
      $region23: #{tpu_custom_call.1} parent=5 // pred_region
        // Predicated region
        $region25: #{tpu_custom_call.1} parent=23 // pred_check
          %p147 = pneg %p46
        $region26: #{tpu_custom_call.1} parent=23 // pred_check_branch
          %149 = sbr.rel (%p147) target = $region28
        $region27: #{tpu_custom_call.1} parent=23 // pred_region
          %s150 = sand.u32 %s36, 1
          %s151 = scalar_lea.sflag [#allocation3], %s150
          %s152 = sand.u32 %s36, 1
          %s153 = smul.addr %s152, 8
          %s154 = scalar_lea.vmem [#allocation2], %s153
          %s155 = smul.u32 2, %s20
          %s157 = ssub.s32 128, 128
          %158 = vsyncadd %s151, %s157
          %s159 = smul.addr %s19, 2
          %s160 = sadd.s32 %s155, %s159
          %s161 = smul.addr %s160, 64
          %s162 = scalar_lea.hbm %s0, %s161
          %s164 = sshll.u32 %s154, 4
          %s165 = int_to_ptr.vmem [resolvable:$true] %s164
          %167 = dma.hbm_to_vmem [thread:$0]  %s162, 128, %s165, %s151
        $region28: #{tpu_custom_call.1} parent=23 // pred_fallthru
          _
      $region24: #{tpu_custom_call.1} parent=5 // pred_fallthru
        _
      %p168 = scmp.le.s32.totalorder 1, %s12
      %p169 = scmp.lt.s32.totalorder %s12, 3
      %p170 = pnand %p168, %p169
      %p171 = pneg %p170
      // Predicated region
      $region29: #{tpu_custom_call.1} parent=5 // pred_check
        _
      $region30: #{tpu_custom_call.1} parent=5 // pred_check_branch
        %173 = sbr.rel (%p170) target = $region32
      $region31: #{tpu_custom_call.1} parent=5 // pred_region
        %s174 = ssub.s32 %s12, 1
        %s175 = sand.u32 %s39, 1
        %s176 = scalar_lea.sflag [#allocation3], %s175
        %s177 = sand.u32 %s39, 1
        %s178 = smul.addr %s177, 8
        %s179 = scalar_lea.vmem [#allocation2], %s178
        // Predicated region
        $region33: #{tpu_custom_call.1} parent=31 // pred_check
          %p180 = pneg %p52
        $region34: #{tpu_custom_call.1} parent=31 // pred_check_branch
          %182 = sbr.rel (%p180) target = $region36
        $region35: #{tpu_custom_call.1} parent=31 // pred_region
          %183 = dma.done %s176, 128
        $region36: #{tpu_custom_call.1} parent=31 // pred_fallthru
          _
        %s184 = sand.u32 %s39, 1
        %s185 = scalar_lea.sflag [#allocation3], %s184
        %s186 = sand.u32 %s39, 1
        %s187 = smul.addr %s186, 8
        %s188 = scalar_lea.vmem [#allocation2], %s187
        %p189 = pneg %p52
        %p190 = pneg %p49
        %p191 = pneg %p73
        %p192 = pneg %p70
        %p193 = pneg %p94
        %p194 = pneg %p91
        %p195 = pneg %p122
        %p196 = pneg %p119
        %s197 = smul.u32 2, %s22
        %p198 = scmp.lt.s32.totalorder %s21, 1
        %s199 = scalar_select %p198, %s21, 1
        %p200 = scmp.lt.s32.totalorder %s197, 1
        %s201 = scalar_select %p200, %s197, 1
        %s202 = smul.addr %s199, 2
        %s203 = sadd.s32 %s201, %s202
        %s204 = smul.addr %s203, 4
        %s205 = scalar_lea.vmem %s3, %s204
        %s206 = smul.u32 2, %s22
        %s207 = smul.u32 2, %s22
        %p208 = scmp.lt.s32.totalorder %s21, 1
        %s209 = scalar_select %p208, %s21, 1
        %p210 = scmp.lt.s32.totalorder %s207, 1
        %s211 = scalar_select %p210, %s207, 1
        %s212 = smul.addr %s209, 2
        %s213 = sadd.s32 %s211, %s212
        %s214 = smul.addr %s213, 4
        %s215 = scalar_lea.vmem %s3, %s214
        %s216 = smul.u32 2, %s22
        %v217 = vld [vmem:[%s2] sm:$0x7]
        %v218 = vld [vmem:[%s1] sm:$0x7]
        %v219 = vld [vmem:[%s179] sm:$0xff]
        %221 = vset.pattern.permute.xlu0 0
        %222 = vperm.xlu0 %221, %v218
        %v223 = vpop.permute.xlu0 %222
        %v226 = vlaneseq
        %v227 = vshrl.u32 %v226, 7
        %v228 = vsub.s32 0, %v227
        %v229 = vrot.slane %v219, %v228
        %v230 = vlaneseq
        %v231 = vshrl.u32 %v230, 7
        %v232 = vsub.s32 4, %v231
        %v233 = vrot.slane %v219, %v232
        %v236 = vlaneseq
        %v237 = vshrl.u32 %v236, 7
        %v238 = vsub.s32 0, %v237
        %v239 = vrot.slane %v229, %v238
        %v240 = vlaneseq
        %v241 = vshrl.u32 %v240, 7
        %v242 = vsub.s32 0, %v241
        %v243 = vrot.slane %v233, %v242
        %v244 = vmul.f32 %v223, %v239
        %v245 = vmul.f32 %v223, %v243
        %246 = vset.pattern.permute.xlu0 1
        %247 = vperm.xlu0 %246, %v218
        %v248 = vpop.permute.xlu0 %247
        %v250 = vlaneseq
        %v251 = vshrl.u32 %v250, 7
        %v252 = vsub.s32 1, %v251
        %v253 = vrot.slane %v219, %v252
        %v254 = vlaneseq
        %v255 = vshrl.u32 %v254, 7
        %v256 = vsub.s32 5, %v255
        %v257 = vrot.slane %v219, %v256
        %v260 = vlaneseq
        %v261 = vshrl.u32 %v260, 7
        %v262 = vsub.s32 1, %v261
        %v263 = vrot.slane %v253, %v262
        %v264 = vlaneseq
        %v265 = vshrl.u32 %v264, 7
        %v266 = vsub.s32 1, %v265
        %v267 = vrot.slane %v257, %v266
        %v268 = vmul.f32 %v248, %v263
        %v269 = vmul.f32 %v248, %v267
        %v270 = vadd.f32 %v244, %v268
        %v271 = vadd.f32 %v245, %v269
        %272 = vset.pattern.permute.xlu0 2
        %273 = vperm.xlu0 %272, %v218
        %v274 = vpop.permute.xlu0 %273
        %v276 = vlaneseq
        %v277 = vshrl.u32 %v276, 7
        %v278 = vsub.s32 2, %v277
        %v279 = vrot.slane %v219, %v278
        %v280 = vlaneseq
        %v281 = vshrl.u32 %v280, 7
        %v282 = vsub.s32 6, %v281
        %v283 = vrot.slane %v219, %v282
        %v286 = vlaneseq
        %v287 = vshrl.u32 %v286, 7
        %v288 = vsub.s32 2, %v287
        %v289 = vrot.slane %v279, %v288
        %v290 = vlaneseq
        %v291 = vshrl.u32 %v290, 7
        %v292 = vsub.s32 2, %v291
        %v293 = vrot.slane %v283, %v292
        %v294 = vmul.f32 %v274, %v289
        %v295 = vmul.f32 %v274, %v293
        %v296 = vadd.f32 %v270, %v294
        %v297 = vadd.f32 %v271, %v295
        %298 = vset.pattern.permute.xlu0 3
        %299 = vperm.xlu0 %298, %v218
        %v300 = vpop.permute.xlu0 %299
        %v302 = vlaneseq
        %v303 = vshrl.u32 %v302, 7
        %v304 = vsub.s32 3, %v303
        %v305 = vrot.slane %v219, %v304
        %v306 = vlaneseq
        %v307 = vshrl.u32 %v306, 7
        %v308 = vsub.s32 7, %v307
        %v309 = vrot.slane %v219, %v308
        %v312 = vlaneseq
        %v313 = vshrl.u32 %v312, 7
        %v314 = vsub.s32 3, %v313
        %v315 = vrot.slane %v305, %v314
        %v316 = vlaneseq
        %v317 = vshrl.u32 %v316, 7
        %v318 = vsub.s32 3, %v317
        %v319 = vrot.slane %v309, %v318
        %v320 = vmul.f32 %v300, %v315
        %v321 = vmul.f32 %v300, %v319
        %v322 = vadd.f32 %v296, %v320
        %v323 = vadd.f32 %v297, %v321
        %325 = vset.pattern.permute.xlu0 0
        %326 = vperm.xlu0 %325, %v217
        %v327 = vpop.permute.xlu0 %326
        %v329 = vadd.f32 %v322, %v327
        %v330 = vadd.f32 %v323, %v327
        %v333 = vcombine.low %v329, %v330
        %335 = vst [vmem:[%s215] sm:$0x77] %v333
        %s336 = smul.u32 2, %s22
        %p337 = scmp.lt.s32.totalorder %s21, 1
        %s338 = scalar_select %p337, %s21, 1
        %p339 = scmp.lt.s32.totalorder %s336, 1
        %s340 = scalar_select %p339, %s336, 1
        %s341 = smul.addr %s338, 2
        %s342 = sadd.s32 %s340, %s341
        %s343 = smul.addr %s342, 4
        %s344 = scalar_lea.vmem %s3, %s343
        // Predicated region
        $region37: #{tpu_custom_call.1} parent=31 // pred_check
          %p345 = pneg %p119
        $region38: #{tpu_custom_call.1} parent=31 // pred_check_branch
          %347 = sbr.rel (%p345) target = $region40
        $region39: #{tpu_custom_call.1} parent=31 // pred_region
          %s348 = smul.u32 2, %s22
        $region40: #{tpu_custom_call.1} parent=31 // pred_fallthru
          _
      $region32: #{tpu_custom_call.1} parent=5 // pred_fallthru
        _
      %p349 = scmp.le.s32.totalorder 2, %s12
      // Predicated region
      $region41: #{tpu_custom_call.1} parent=5 // pred_check
        %p350 = pneg %p349
      $region42: #{tpu_custom_call.1} parent=5 // pred_check_branch
        %352 = sbr.rel (%p350) target = $region44
      $region43: #{tpu_custom_call.1} parent=5 // pred_region
        %s353 = ssub.s32 %s12, 2
        // Predicated region
        $region45: #{tpu_custom_call.1} parent=43 // pred_check
          %p354 = pneg %p125
        $region46: #{tpu_custom_call.1} parent=43 // pred_check_branch
          %356 = sbr.rel (%p354) target = $region48
        $region47: #{tpu_custom_call.1} parent=43 // pred_region
          %s357 = smul.u32 2, %s24
          %p358 = scmp.lt.s32.totalorder %s23, 1
          %s359 = scalar_select %p358, %s23, 1
          %p360 = scmp.lt.s32.totalorder %s357, 1
          %s361 = scalar_select %p360, %s357, 1
          %s362 = smul.addr %s359, 2
          %s363 = sadd.s32 %s361, %s362
          %s364 = smul.addr %s363, 4
          %s365 = scalar_lea.vmem %s3, %s364
        $region48: #{tpu_custom_call.1} parent=43 // pred_fallthru
          _
      $region44: #{tpu_custom_call.1} parent=5 // pred_fallthru
        _
    $region6: #{tpu_custom_call.1} parent=1 // loop_footer
      %s16 = sadd.s32 1, %s12
    $region7: #{tpu_custom_call.1} parent=1 // loop_footer_branch
      %11 = sbr.rel target = $region3
    $region8: #{tpu_custom_call.1} parent=1 // loop_exit
      _
    %366 = vsyncpa [#allocation3], 1
    %s367 = scalar_lea.sflag [#allocation3], 1
    %368 = vsyncpa %s367, 1

</llo_original>
